<compile_context>
chip_gen: v7x
topology: tpu7x:2x2x1
jax: 0.10.0
libtpu: 0.0.40
codegen_flags: <defaults>
</compile_context>

<pallas_src>
import functools
import math

import jax
import jax.numpy as jnp
from jax import lax
from jax.experimental import pallas as pl
from jax.experimental.pallas import tpu as pltpu

_HALF_LOG_2PI = 0.5 * math.log(2.0 * math.pi)


def _round_up(x, m):
    return ((x + m - 1) // m) * m


def _fast_recip(x, newton=1):
    """EUP approximate reciprocal + Newton refinement instead of a full divide."""
    r = pl.reciprocal(x, approx=True)
    for _ in range(newton):
        r = r * (2.0 - x * r)
    return r


def _lgamma_digamma(x):
    """Fused log-Gamma / digamma for x >= 1 (float32, ~1e-6 accurate).

    Shift-by-6 recurrence + Stirling / asymptotic series, sharing z = x + 6,
    1/z and log(z).  The digamma recurrence sum_i 1/(x+i) is computed as
    P'(x)/P(x) with a single (approx+Newton) reciprocal, P(x) = x(x+1)...(x+5).
    NOTE: P overflows float32 for x > ~2.6e6 (far outside the EDL evidence
    operating range for small K).
    """
    x1 = x + 1.0
    x2 = x + 2.0
    x3 = x + 3.0
    x4 = x + 4.0
    x5 = x + 5.0
    p01 = x * x1
    p23 = x2 * x3
    p45 = x4 * x5
    q0145 = p01 * p45
    big_p = q0145 * p23
    d_p = ((2.0 * x + 1.0) * (p23 * p45)
           + (2.0 * x + 5.0) * q0145
           + (2.0 * x + 9.0) * (p01 * p23))
    shift_dig = d_p * _fast_recip(big_p, newton=1)   # sum_i 1/(x+i)
    log_shift = jnp.log(big_p)                       # sum_i log(x+i)

    z = x + 6.0
    inv = pl.reciprocal(z, approx=True)              # feeds small correction terms
    inv2 = inv * inv
    logz = jnp.log(z)

    series = inv * (1.0 / 12.0 - inv2 * (1.0 / 360.0 - inv2 * (1.0 / 1260.0)))
    lgamma = (z - 0.5) * logz - z + _HALF_LOG_2PI + series - log_shift

    tail = inv2 * (1.0 / 12.0 - inv2 * (1.0 / 120.0 - inv2 * (1.0 / 252.0)))
    digamma = logz - 0.5 * inv - tail - shift_dig
    return lgamma, digamma


def _edl_mse_kernel(x_ref, t_ref, out_ref, *, n_total, half_stride,
                    num_classes, halves):
    rows, bn = x_ref.shape          # rows = halves * K
    K = num_classes
    i = pl.program_id(0)

    # ---- static-shape index helpers ---------------------------------------
    row = lax.broadcasted_iota(jnp.int32, (rows, bn), 0)
    col = lax.broadcasted_iota(jnp.int32, (rows, bn), 1) + i * bn
    half_idx = jnp.zeros((rows, bn), jnp.int32)
    for h in range(1, halves):                       # avoids int div/mod on VPU
        half_idx = half_idx + (row >= h * K).astype(jnp.int32)
    cls = row - half_idx * K

    sample_e = half_idx * half_stride + col
    valid_e = jnp.logical_and(col < half_stride, sample_e < n_total)

    hrow = lax.broadcasted_iota(jnp.int32, (halves, bn), 0)
    hcol = lax.broadcasted_iota(jnp.int32, (halves, bn), 1) + i * bn
    valid_h = jnp.logical_and(hcol < half_stride,
                              hrow * half_stride + hcol < n_total
                              ).astype(jnp.float32)

    def expand(a_h):        # (halves, bn) -> (rows, bn): repeat each row K times
        out = jnp.broadcast_to(a_h[0:1, :], (rows, bn))
        for h in range(1, halves):
            out = jnp.where(half_idx == h,
                            jnp.broadcast_to(a_h[h:h + 1, :], (rows, bn)), out)
        return out

    def halfsum(a):         # (rows, bn) -> (halves, bn): per-slice sum over K rows
        parts = []
        for h in range(halves):
            s = a[h * K:h * K + 1, :]
            for k in range(1, K):
                s = s + a[h * K + k:h * K + k + 1, :]
            parts.append(s)
        if halves == 1:
            return parts[0]
        out = jnp.broadcast_to(parts[0], (halves, bn))
        for h in range(1, halves):
            out = jnp.where(hrow == h,
                            jnp.broadcast_to(parts[h], (halves, bn)), out)
        return out

    # ---- sanitize pad / out-of-bounds columns before any transcendental ----
    x = jnp.where(valid_e, x_ref[...], 0.0)          # (rows, bn) f32 evidence
    alpha = x + 1.0
    tgt = expand(t_ref[...])                         # (rows, bn) int32
    y = (cls == tgt)                                 # one-hot (bool)

    # ---- MSE evidential loss ------------------------------------------------
    S = halfsum(alpha)                               # (halves, bn)
    inv_s = _fast_recip(S)
    inv_s1 = _fast_recip(S + 1.0)
    p_hat = alpha * expand(inv_s)                    # (rows, bn)
    diff = p_hat - y.astype(jnp.float32)
    err_smp = halfsum(diff * diff)                   # per-sample (halves, bn)
    var_smp = halfsum(p_hat - p_hat * p_hat) * inv_s1

    # ---- KL(Dir(alpha_tilde) || Dir(1)); -N*lgamma(K) added in the wrapper --
    alpha_t = jnp.where(y, 1.0, alpha)               # y + (1-y)*alpha
    s_t = halfsum(alpha_t)                           # (halves, bn)
    lg_a, dg_a = _lgamma_digamma(alpha_t)            # (rows, bn)
    lg_s, dg_s = _lgamma_digamma(s_t)                # (halves, bn), all slices at once
    # sum_k (a_t-1)*digamma(S_t) == digamma(S_t)*(S_t - K): stays per-sample.
    kl_smp = halfsum((alpha_t - 1.0) * dg_a - lg_a) + lg_s - dg_s * (s_t - float(K))

    # one set of cross-lane reductions per block
    err_part = jnp.sum(err_smp * valid_h)
    var_part = jnp.sum(var_smp * valid_h)
    kl_part = jnp.sum(kl_smp * valid_h)

    lane = lax.broadcasted_iota(jnp.int32, (1, 1, 128), 2)
    out_ref[...] = (jnp.where(lane == 0, err_part, 0.0)
                    + jnp.where(lane == 1, var_part, 0.0)
                    + jnp.where(lane == 2, kl_part, 0.0))


def edl_loss(evidence, target, num_classes=4, annealing_step=10, epoch=None,
             block_n=4096):
    """Pallas implementation of EDLLoss(loss='mse').forward.

    Returns (total_loss, losses) where all loss values are jnp float32 scalars
    (no host syncs), keys matching the PyTorch module:
    err/var/mse/loss/kl/reg/total.
    """
    N, K = evidence.shape
    assert K == num_classes
    # The packed (halves*K, cols) layout and unrolled per-half sums assume the
    # class axis fits inside one 8-sublane tile.
    assert 1 <= K <= 8, "num_classes > 8 not supported by this kernel layout"
    halves = max(1, 8 // K)                # batch slices stacked on sublanes
    rows = halves * K
    coef = 1.0 if epoch is None else min(1.0, epoch / annealing_step)

    # columns per batch slice: >= 128, multiple of 128 (lane width); NOT padded
    # to a multiple of the block -- the last partial block is masked in-kernel.
    cols = max(128, _round_up(pl.cdiv(N, halves), 128))

    bn = max(128, _round_up(min(block_n, cols), 128))
    if cols >= 256:                        # keep >= 2 blocks so both v7x TCs get work
        bn = min(bn, _round_up(pl.cdiv(cols, 2), 128))
    bn = min(bn, cols)
    nb = pl.cdiv(cols, bn)

    # Single fused relayout pass: pad batch -> split into slices -> swap the
    # class/column axes (the reshapes are free; only the axis swap copies).
    total = halves * cols
    ev = jnp.pad(evidence.astype(jnp.float32), ((0, total - N), (0, 0)))
    ev = ev.reshape(halves, cols, K).transpose(0, 2, 1).reshape(rows, cols)
    tgt = jnp.pad(target.astype(jnp.int32), (0, total - N)).reshape(halves, cols)

    kernel = functools.partial(_edl_mse_kernel, n_total=N, half_stride=cols,
                               num_classes=K, halves=halves)

    cost = pl.CostEstimate(
        flops=int((70 * K + 70) * N),
        transcendentals=int((3 * K + 6) * N),
        bytes_accessed=int(4 * (K + 1) * N + 512 * nb),
    )

    partials = pl.pallas_call(
        kernel,
        out_shape=jax.ShapeDtypeStruct((nb, 1, 128), jnp.float32),
        grid=(nb,),
        in_specs=[
            pl.BlockSpec((rows, bn), lambda i: (0, i)),     # evidence (rows, cols)
            pl.BlockSpec((halves, bn), lambda i: (0, i)),   # targets  (halves, cols)
        ],
        out_specs=pl.BlockSpec((1, 1, 128), lambda i: (i, 0, 0)),
        compiler_params=pltpu.CompilerParams(
            dimension_semantics=("parallel",)),
        cost_estimate=cost,
    )(ev, tgt)

    sums = jnp.sum(partials[:, 0, :], axis=0)               # (128,)
    err = sums[0]
    var = sums[1]
    kl = sums[2] - jnp.float32(N * math.lgamma(float(K)))
    mse = err + var
    reg = coef * kl
    total_loss = mse + reg
    losses = {'err': err, 'var': var, 'mse': mse, 'loss': mse,
              'kl': kl, 'reg': reg, 'total': total_loss}
    return total_loss, losses


def _edl_loss_ref(evidence, target, num_classes=4, annealing_step=10, epoch=None):
    """Pure-JAX reference (jax.scipy.special) for verification."""
    from jax.scipy.special import gammaln, digamma
    alpha = evidence.astype(jnp.float32) + 1.0
    N, K = alpha.shape
    y = jax.nn.one_hot(target, num_classes, dtype=jnp.float32)
    coef = 1.0 if epoch is None else min(1.0, epoch / annealing_step)

    S = jnp.sum(alpha, axis=1, keepdims=True)
    p_hat = alpha / S
    err = jnp.sum((p_hat - y) ** 2)
    var = jnp.sum(p_hat * (1.0 - p_hat) / (S + 1.0))
    mse = err + var

    a_t = y + (1.0 - y) * alpha
    S_t = jnp.sum(a_t, axis=1, keepdims=True)
    kl = (jnp.sum(gammaln(S_t)) - N * gammaln(jnp.float32(K))
          - jnp.sum(gammaln(a_t))
          + jnp.sum((a_t - 1.0) * (digamma(a_t) - digamma(S_t))))
    return mse + coef * kl


if __name__ == "__main__":
    key = jax.random.PRNGKey(0)

    def _check(n, k, epoch, block_n):
        kk = jax.random.fold_in(key, n)
        k1, k2 = jax.random.split(kk)
        evidence = jax.random.uniform(k1, (n, k), dtype=jnp.float32,
                                      minval=0.0, maxval=5.0)
        target = jax.random.randint(k2, (n,), 0, k, dtype=jnp.int32)

        total, losses = edl_loss(evidence, target, num_classes=k,
                                 annealing_step=10, epoch=epoch,
                                 block_n=block_n)
        total = jax.block_until_ready(total)
        ref = float(_edl_loss_ref(evidence, target, num_classes=k,
                                  annealing_step=10, epoch=epoch))
        assert abs(float(total) - ref) <= 2e-3 * max(1.0, abs(ref)), (
            float(total), ref)

    # single block (nb=1), tiny batch padded/masked inside 128 lanes
    _check(8, 4, 3, 4096)
    # multi-block "parallel" grid (nb=2), evenly split batch halves
    _check(300, 4, None, 128)
    # partial last block (cols=384, bn=256): exercises OOB-read sanitization
    _check(700, 4, 5, 256)

    print("KERNEL_OK")
</pallas_src>

<mosaic_0001>
module attributes {stable_mosaic.version = 11 : i64} {
  func.func @_edl_mse_kernel(%arg0: i32, %arg1: memref<8x128xf32, #tpu.memory_space<vmem>>, %arg2: memref<2x128xi32, #tpu.memory_space<vmem>>, %arg3: memref<1x1x128xf32, #tpu.memory_space<vmem>>) attributes {dimension_semantics = [#tpu.dimension_semantics<parallel>], iteration_bounds = array<i64: 1>, scalar_prefetch = 0 : i64, scratch_operands = 0 : i64, tpu.core_type = #tpu.core_type<tc>, window_params = [{transform_indices = @transform_0, window_bounds = array<i64: 8, 128>}, {transform_indices = @transform_1, window_bounds = array<i64: 2, 128>}, {transform_indices = @transform_2, window_bounds = array<i64: 1, 1, 128>}]} {
    %0 = tpu.iota {dimensions = array<i32: 0>} : vector<8x128xi32>
    %1 = tpu.iota {dimensions = array<i32: 1>} : vector<8x128xi32>
    %c128_i32 = arith.constant 128 : i32
    %2 = arith.muli %arg0, %c128_i32 : i32
    %3 = vector.broadcast %2 : i32 to vector<8x128xi32>
    %4 = arith.addi %1, %3 : vector<8x128xi32>
    %c0_i32 = arith.constant 0 : i32
    %5 = vector.broadcast %c0_i32 : i32 to vector<8x128xi32>
    %c4_i32 = arith.constant 4 : i32
    %6 = vector.broadcast %c4_i32 : i32 to vector<8x128xi32>
    %7 = arith.cmpi sge, %0, %6 : vector<8x128xi32>
    %8 = arith.extui %7 : vector<8x128xi1> to vector<8x128xi32>
    %9 = arith.addi %5, %8 : vector<8x128xi32>
    %c4_i32_0 = arith.constant 4 : i32
    %10 = vector.broadcast %c4_i32_0 : i32 to vector<8x128xi32>
    %11 = arith.muli %9, %10 : vector<8x128xi32>
    %12 = arith.subi %0, %11 : vector<8x128xi32>
    %c128_i32_1 = arith.constant 128 : i32
    %13 = vector.broadcast %c128_i32_1 : i32 to vector<8x128xi32>
    %14 = arith.muli %9, %13 : vector<8x128xi32>
    %15 = arith.addi %14, %4 : vector<8x128xi32>
    %c128_i32_2 = arith.constant 128 : i32
    %16 = vector.broadcast %c128_i32_2 : i32 to vector<8x128xi32>
    %17 = arith.cmpi slt, %4, %16 : vector<8x128xi32>
    %c8_i32 = arith.constant 8 : i32
    %18 = vector.broadcast %c8_i32 : i32 to vector<8x128xi32>
    %19 = arith.cmpi slt, %15, %18 : vector<8x128xi32>
    %20 = arith.andi %17, %19 : vector<8x128xi1>
    %21 = tpu.iota {dimensions = array<i32: 0>} : vector<2x128xi32>
    %22 = tpu.iota {dimensions = array<i32: 1>} : vector<2x128xi32>
    %c128_i32_3 = arith.constant 128 : i32
    %23 = arith.muli %arg0, %c128_i32_3 : i32
    %24 = vector.broadcast %23 : i32 to vector<2x128xi32>
    %25 = arith.addi %22, %24 : vector<2x128xi32>
    %c128_i32_4 = arith.constant 128 : i32
    %26 = vector.broadcast %c128_i32_4 : i32 to vector<2x128xi32>
    %27 = arith.cmpi slt, %25, %26 : vector<2x128xi32>
    %c128_i32_5 = arith.constant 128 : i32
    %28 = vector.broadcast %c128_i32_5 : i32 to vector<2x128xi32>
    %29 = arith.muli %21, %28 : vector<2x128xi32>
    %30 = arith.addi %29, %25 : vector<2x128xi32>
    %c8_i32_6 = arith.constant 8 : i32
    %31 = vector.broadcast %c8_i32_6 : i32 to vector<2x128xi32>
    %32 = arith.cmpi slt, %30, %31 : vector<2x128xi32>
    %33 = arith.andi %27, %32 : vector<2x128xi1>
    %34 = arith.extui %33 : vector<2x128xi1> to vector<2x128xi32>
    %35 = arith.sitofp %34 : vector<2x128xi32> to vector<2x128xf32>
    %c0 = arith.constant 0 : index
    %c0_7 = arith.constant 0 : index
    %36 = vector.load %arg1[%c0, %c0_7] : memref<8x128xf32, #tpu.memory_space<vmem>>, vector<8x128xf32>
    %cst = arith.constant 0.000000e+00 : f32
    %37 = vector.broadcast %cst : f32 to vector<8x128xf32>
    %38 = arith.select %20, %36, %37 : vector<8x128xi1>, vector<8x128xf32>
    %cst_8 = arith.constant 1.000000e+00 : f32
    %39 = vector.broadcast %cst_8 : f32 to vector<8x128xf32>
    %40 = arith.addf %38, %39 : vector<8x128xf32>
    %c0_9 = arith.constant 0 : index
    %c0_10 = arith.constant 0 : index
    %41 = vector.load %arg2[%c0_9, %c0_10] : memref<2x128xi32, #tpu.memory_space<vmem>>, vector<2x128xi32>
    %42 = vector.extract_strided_slice %41 {offsets = [0, 0], sizes = [1, 128], strides = [1, 1]} : vector<2x128xi32> to vector<1x128xi32>
    %43 = vector.shape_cast %42 : vector<1x128xi32> to vector<1x128xi32>
    %44 = vector.broadcast %43 : vector<1x128xi32> to vector<8x128xi32>
    %c1_i32 = arith.constant 1 : i32
    %45 = vector.broadcast %c1_i32 : i32 to vector<8x128xi32>
    %46 = arith.cmpi eq, %9, %45 : vector<8x128xi32>
    %47 = vector.extract_strided_slice %41 {offsets = [1, 0], sizes = [1, 128], strides = [1, 1]} : vector<2x128xi32> to vector<1x128xi32>
    %48 = vector.shape_cast %47 : vector<1x128xi32> to vector<1x128xi32>
    %49 = vector.broadcast %48 : vector<1x128xi32> to vector<8x128xi32>
    %50 = arith.select %46, %49, %44 : vector<8x128xi1>, vector<8x128xi32>
    %51 = arith.cmpi eq, %12, %50 : vector<8x128xi32>
    %52 = vector.extract_strided_slice %40 {offsets = [0, 0], sizes = [1, 128], strides = [1, 1]} : vector<8x128xf32> to vector<1x128xf32>
    %53 = vector.extract_strided_slice %40 {offsets = [1, 0], sizes = [1, 128], strides = [1, 1]} : vector<8x128xf32> to vector<1x128xf32>
    %54 = arith.addf %52, %53 : vector<1x128xf32>
    %55 = vector.extract_strided_slice %40 {offsets = [2, 0], sizes = [1, 128], strides = [1, 1]} : vector<8x128xf32> to vector<1x128xf32>
    %56 = arith.addf %54, %55 : vector<1x128xf32>
    %57 = vector.extract_strided_slice %40 {offsets = [3, 0], sizes = [1, 128], strides = [1, 1]} : vector<8x128xf32> to vector<1x128xf32>
    %58 = arith.addf %56, %57 : vector<1x128xf32>
    %59 = vector.extract_strided_slice %40 {offsets = [4, 0], sizes = [1, 128], strides = [1, 1]} : vector<8x128xf32> to vector<1x128xf32>
    %60 = vector.extract_strided_slice %40 {offsets = [5, 0], sizes = [1, 128], strides = [1, 1]} : vector<8x128xf32> to vector<1x128xf32>
    %61 = arith.addf %59, %60 : vector<1x128xf32>
    %62 = vector.extract_strided_slice %40 {offsets = [6, 0], sizes = [1, 128], strides = [1, 1]} : vector<8x128xf32> to vector<1x128xf32>
    %63 = arith.addf %61, %62 : vector<1x128xf32>
    %64 = vector.extract_strided_slice %40 {offsets = [7, 0], sizes = [1, 128], strides = [1, 1]} : vector<8x128xf32> to vector<1x128xf32>
    %65 = arith.addf %63, %64 : vector<1x128xf32>
    %66 = vector.shape_cast %58 : vector<1x128xf32> to vector<1x128xf32>
    %67 = vector.broadcast %66 : vector<1x128xf32> to vector<2x128xf32>
    %c1_i32_11 = arith.constant 1 : i32
    %68 = vector.broadcast %c1_i32_11 : i32 to vector<2x128xi32>
    %69 = arith.cmpi eq, %21, %68 : vector<2x128xi32>
    %70 = vector.shape_cast %65 : vector<1x128xf32> to vector<1x128xf32>
    %71 = vector.broadcast %70 : vector<1x128xf32> to vector<2x128xf32>
    %72 = arith.select %69, %71, %67 : vector<2x128xi1>, vector<2x128xf32>
    %73 = tpu.reciprocal %72 {approx = true} : vector<2x128xf32> -> vector<2x128xf32>
    %74 = arith.mulf %72, %73 : vector<2x128xf32>
    %cst_12 = arith.constant 2.000000e+00 : f32
    %75 = vector.broadcast %cst_12 : f32 to vector<2x128xf32>
    %76 = arith.subf %75, %74 : vector<2x128xf32>
    %77 = arith.mulf %73, %76 : vector<2x128xf32>
    %cst_13 = arith.constant 1.000000e+00 : f32
    %78 = vector.broadcast %cst_13 : f32 to vector<2x128xf32>
    %79 = arith.addf %72, %78 : vector<2x128xf32>
    %80 = tpu.reciprocal %79 {approx = true} : vector<2x128xf32> -> vector<2x128xf32>
    %81 = arith.mulf %79, %80 : vector<2x128xf32>
    %cst_14 = arith.constant 2.000000e+00 : f32
    %82 = vector.broadcast %cst_14 : f32 to vector<2x128xf32>
    %83 = arith.subf %82, %81 : vector<2x128xf32>
    %84 = arith.mulf %80, %83 : vector<2x128xf32>
    %85 = vector.extract_strided_slice %77 {offsets = [0, 0], sizes = [1, 128], strides = [1, 1]} : vector<2x128xf32> to vector<1x128xf32>
    %86 = vector.shape_cast %85 : vector<1x128xf32> to vector<1x128xf32>
    %87 = vector.broadcast %86 : vector<1x128xf32> to vector<8x128xf32>
    %c1_i32_15 = arith.constant 1 : i32
    %88 = vector.broadcast %c1_i32_15 : i32 to vector<8x128xi32>
    %89 = arith.cmpi eq, %9, %88 : vector<8x128xi32>
    %90 = vector.extract_strided_slice %77 {offsets = [1, 0], sizes = [1, 128], strides = [1, 1]} : vector<2x128xf32> to vector<1x128xf32>
    %91 = vector.shape_cast %90 : vector<1x128xf32> to vector<1x128xf32>
    %92 = vector.broadcast %91 : vector<1x128xf32> to vector<8x128xf32>
    %93 = arith.select %89, %92, %87 : vector<8x128xi1>, vector<8x128xf32>
    %94 = arith.mulf %40, %93 : vector<8x128xf32>
    %95 = arith.extui %51 : vector<8x128xi1> to vector<8x128xi32>
    %96 = arith.sitofp %95 : vector<8x128xi32> to vector<8x128xf32>
    %97 = arith.subf %94, %96 : vector<8x128xf32>
    %98 = arith.mulf %97, %97 : vector<8x128xf32>
    %99 = vector.extract_strided_slice %98 {offsets = [0, 0], sizes = [1, 128], strides = [1, 1]} : vector<8x128xf32> to vector<1x128xf32>
    %100 = vector.extract_strided_slice %98 {offsets = [1, 0], sizes = [1, 128], strides = [1, 1]} : vector<8x128xf32> to vector<1x128xf32>
    %101 = arith.addf %99, %100 : vector<1x128xf32>
    %102 = vector.extract_strided_slice %98 {offsets = [2, 0], sizes = [1, 128], strides = [1, 1]} : vector<8x128xf32> to vector<1x128xf32>
    %103 = arith.addf %101, %102 : vector<1x128xf32>
    %104 = vector.extract_strided_slice %98 {offsets = [3, 0], sizes = [1, 128], strides = [1, 1]} : vector<8x128xf32> to vector<1x128xf32>
    %105 = arith.addf %103, %104 : vector<1x128xf32>
    %106 = vector.extract_strided_slice %98 {offsets = [4, 0], sizes = [1, 128], strides = [1, 1]} : vector<8x128xf32> to vector<1x128xf32>
    %107 = vector.extract_strided_slice %98 {offsets = [5, 0], sizes = [1, 128], strides = [1, 1]} : vector<8x128xf32> to vector<1x128xf32>
    %108 = arith.addf %106, %107 : vector<1x128xf32>
    %109 = vector.extract_strided_slice %98 {offsets = [6, 0], sizes = [1, 128], strides = [1, 1]} : vector<8x128xf32> to vector<1x128xf32>
    %110 = arith.addf %108, %109 : vector<1x128xf32>
    %111 = vector.extract_strided_slice %98 {offsets = [7, 0], sizes = [1, 128], strides = [1, 1]} : vector<8x128xf32> to vector<1x128xf32>
    %112 = arith.addf %110, %111 : vector<1x128xf32>
    %113 = vector.shape_cast %105 : vector<1x128xf32> to vector<1x128xf32>
    %114 = vector.broadcast %113 : vector<1x128xf32> to vector<2x128xf32>
    %c1_i32_16 = arith.constant 1 : i32
    %115 = vector.broadcast %c1_i32_16 : i32 to vector<2x128xi32>
    %116 = arith.cmpi eq, %21, %115 : vector<2x128xi32>
    %117 = vector.shape_cast %112 : vector<1x128xf32> to vector<1x128xf32>
    %118 = vector.broadcast %117 : vector<1x128xf32> to vector<2x128xf32>
    %119 = arith.select %116, %118, %114 : vector<2x128xi1>, vector<2x128xf32>
    %120 = arith.mulf %94, %94 : vector<8x128xf32>
    %121 = arith.subf %94, %120 : vector<8x128xf32>
    %122 = vector.extract_strided_slice %121 {offsets = [0, 0], sizes = [1, 128], strides = [1, 1]} : vector<8x128xf32> to vector<1x128xf32>
    %123 = vector.extract_strided_slice %121 {offsets = [1, 0], sizes = [1, 128], strides = [1, 1]} : vector<8x128xf32> to vector<1x128xf32>
    %124 = arith.addf %122, %123 : vector<1x128xf32>
    %125 = vector.extract_strided_slice %121 {offsets = [2, 0], sizes = [1, 128], strides = [1, 1]} : vector<8x128xf32> to vector<1x128xf32>
    %126 = arith.addf %124, %125 : vector<1x128xf32>
    %127 = vector.extract_strided_slice %121 {offsets = [3, 0], sizes = [1, 128], strides = [1, 1]} : vector<8x128xf32> to vector<1x128xf32>
    %128 = arith.addf %126, %127 : vector<1x128xf32>
    %129 = vector.extract_strided_slice %121 {offsets = [4, 0], sizes = [1, 128], strides = [1, 1]} : vector<8x128xf32> to vector<1x128xf32>
    %130 = vector.extract_strided_slice %121 {offsets = [5, 0], sizes = [1, 128], strides = [1, 1]} : vector<8x128xf32> to vector<1x128xf32>
    %131 = arith.addf %129, %130 : vector<1x128xf32>
    %132 = vector.extract_strided_slice %121 {offsets = [6, 0], sizes = [1, 128], strides = [1, 1]} : vector<8x128xf32> to vector<1x128xf32>
    %133 = arith.addf %131, %132 : vector<1x128xf32>
    %134 = vector.extract_strided_slice %121 {offsets = [7, 0], sizes = [1, 128], strides = [1, 1]} : vector<8x128xf32> to vector<1x128xf32>
    %135 = arith.addf %133, %134 : vector<1x128xf32>
    %136 = vector.shape_cast %128 : vector<1x128xf32> to vector<1x128xf32>
    %137 = vector.broadcast %136 : vector<1x128xf32> to vector<2x128xf32>
    %c1_i32_17 = arith.constant 1 : i32
    %138 = vector.broadcast %c1_i32_17 : i32 to vector<2x128xi32>
    %139 = arith.cmpi eq, %21, %138 : vector<2x128xi32>
    %140 = vector.shape_cast %135 : vector<1x128xf32> to vector<1x128xf32>
    %141 = vector.broadcast %140 : vector<1x128xf32> to vector<2x128xf32>
    %142 = arith.select %139, %141, %137 : vector<2x128xi1>, vector<2x128xf32>
    %143 = arith.mulf %142, %84 : vector<2x128xf32>
    %cst_18 = arith.constant 1.000000e+00 : f32
    %144 = vector.broadcast %cst_18 : f32 to vector<8x128xf32>
    %145 = arith.select %51, %144, %40 : vector<8x128xi1>, vector<8x128xf32>
    %146 = vector.extract_strided_slice %145 {offsets = [0, 0], sizes = [1, 128], strides = [1, 1]} : vector<8x128xf32> to vector<1x128xf32>
    %147 = vector.extract_strided_slice %145 {offsets = [1, 0], sizes = [1, 128], strides = [1, 1]} : vector<8x128xf32> to vector<1x128xf32>
    %148 = arith.addf %146, %147 : vector<1x128xf32>
    %149 = vector.extract_strided_slice %145 {offsets = [2, 0], sizes = [1, 128], strides = [1, 1]} : vector<8x128xf32> to vector<1x128xf32>
    %150 = arith.addf %148, %149 : vector<1x128xf32>
    %151 = vector.extract_strided_slice %145 {offsets = [3, 0], sizes = [1, 128], strides = [1, 1]} : vector<8x128xf32> to vector<1x128xf32>
    %152 = arith.addf %150, %151 : vector<1x128xf32>
    %153 = vector.extract_strided_slice %145 {offsets = [4, 0], sizes = [1, 128], strides = [1, 1]} : vector<8x128xf32> to vector<1x128xf32>
    %154 = vector.extract_strided_slice %145 {offsets = [5, 0], sizes = [1, 128], strides = [1, 1]} : vector<8x128xf32> to vector<1x128xf32>
    %155 = arith.addf %153, %154 : vector<1x128xf32>
    %156 = vector.extract_strided_slice %145 {offsets = [6, 0], sizes = [1, 128], strides = [1, 1]} : vector<8x128xf32> to vector<1x128xf32>
    %157 = arith.addf %155, %156 : vector<1x128xf32>
    %158 = vector.extract_strided_slice %145 {offsets = [7, 0], sizes = [1, 128], strides = [1, 1]} : vector<8x128xf32> to vector<1x128xf32>
    %159 = arith.addf %157, %158 : vector<1x128xf32>
    %160 = vector.shape_cast %152 : vector<1x128xf32> to vector<1x128xf32>
    %161 = vector.broadcast %160 : vector<1x128xf32> to vector<2x128xf32>
    %c1_i32_19 = arith.constant 1 : i32
    %162 = vector.broadcast %c1_i32_19 : i32 to vector<2x128xi32>
    %163 = arith.cmpi eq, %21, %162 : vector<2x128xi32>
    %164 = vector.shape_cast %159 : vector<1x128xf32> to vector<1x128xf32>
    %165 = vector.broadcast %164 : vector<1x128xf32> to vector<2x128xf32>
    %166 = arith.select %163, %165, %161 : vector<2x128xi1>, vector<2x128xf32>
    %cst_20 = arith.constant 1.000000e+00 : f32
    %167 = vector.broadcast %cst_20 : f32 to vector<8x128xf32>
    %168 = arith.addf %145, %167 : vector<8x128xf32>
    %cst_21 = arith.constant 2.000000e+00 : f32
    %169 = vector.broadcast %cst_21 : f32 to vector<8x128xf32>
    %170 = arith.addf %145, %169 : vector<8x128xf32>
    %cst_22 = arith.constant 3.000000e+00 : f32
    %171 = vector.broadcast %cst_22 : f32 to vector<8x128xf32>
    %172 = arith.addf %145, %171 : vector<8x128xf32>
    %cst_23 = arith.constant 4.000000e+00 : f32
    %173 = vector.broadcast %cst_23 : f32 to vector<8x128xf32>
    %174 = arith.addf %145, %173 : vector<8x128xf32>
    %cst_24 = arith.constant 5.000000e+00 : f32
    %175 = vector.broadcast %cst_24 : f32 to vector<8x128xf32>
    %176 = arith.addf %145, %175 : vector<8x128xf32>
    %177 = arith.mulf %145, %168 : vector<8x128xf32>
    %178 = arith.mulf %170, %172 : vector<8x128xf32>
    %179 = arith.mulf %174, %176 : vector<8x128xf32>
    %180 = arith.mulf %177, %179 : vector<8x128xf32>
    %181 = arith.mulf %180, %178 : vector<8x128xf32>
    %cst_25 = arith.constant 2.000000e+00 : f32
    %182 = vector.broadcast %cst_25 : f32 to vector<8x128xf32>
    %183 = arith.mulf %182, %145 : vector<8x128xf32>
    %cst_26 = arith.constant 1.000000e+00 : f32
    %184 = vector.broadcast %cst_26 : f32 to vector<8x128xf32>
    %185 = arith.addf %183, %184 : vector<8x128xf32>
    %186 = arith.mulf %178, %179 : vector<8x128xf32>
    %187 = arith.mulf %185, %186 : vector<8x128xf32>
    %cst_27 = arith.constant 2.000000e+00 : f32
    %188 = vector.broadcast %cst_27 : f32 to vector<8x128xf32>
    %189 = arith.mulf %188, %145 : vector<8x128xf32>
    %cst_28 = arith.constant 5.000000e+00 : f32
    %190 = vector.broadcast %cst_28 : f32 to vector<8x128xf32>
    %191 = arith.addf %189, %190 : vector<8x128xf32>
    %192 = arith.mulf %191, %180 : vector<8x128xf32>
    %193 = arith.addf %187, %192 : vector<8x128xf32>
    %cst_29 = arith.constant 2.000000e+00 : f32
    %194 = vector.broadcast %cst_29 : f32 to vector<8x128xf32>
    %195 = arith.mulf %194, %145 : vector<8x128xf32>
    %cst_30 = arith.constant 9.000000e+00 : f32
    %196 = vector.broadcast %cst_30 : f32 to vector<8x128xf32>
    %197 = arith.addf %195, %196 : vector<8x128xf32>
    %198 = arith.mulf %177, %178 : vector<8x128xf32>
    %199 = arith.mulf %197, %198 : vector<8x128xf32>
    %200 = arith.addf %193, %199 : vector<8x128xf32>
    %201 = tpu.reciprocal %181 {approx = true} : vector<8x128xf32> -> vector<8x128xf32>
    %202 = arith.mulf %181, %201 : vector<8x128xf32>
    %cst_31 = arith.constant 2.000000e+00 : f32
    %203 = vector.broadcast %cst_31 : f32 to vector<8x128xf32>
    %204 = arith.subf %203, %202 : vector<8x128xf32>
    %205 = arith.mulf %201, %204 : vector<8x128xf32>
    %206 = arith.mulf %200, %205 : vector<8x128xf32>
    %207 = math.log %181 : vector<8x128xf32>
    %cst_32 = arith.constant 6.000000e+00 : f32
    %208 = vector.broadcast %cst_32 : f32 to vector<8x128xf32>
    %209 = arith.addf %145, %208 : vector<8x128xf32>
    %210 = tpu.reciprocal %209 {approx = true} : vector<8x128xf32> -> vector<8x128xf32>
    %211 = arith.mulf %210, %210 : vector<8x128xf32>
    %212 = math.log %209 : vector<8x128xf32>
    %cst_33 = arith.constant 7.93650805E-4 : f32
    %213 = vector.broadcast %cst_33 : f32 to vector<8x128xf32>
    %214 = arith.mulf %211, %213 : vector<8x128xf32>
    %cst_34 = arith.constant 0.00277777785 : f32
    %215 = vector.broadcast %cst_34 : f32 to vector<8x128xf32>
    %216 = arith.subf %215, %214 : vector<8x128xf32>
    %217 = arith.mulf %211, %216 : vector<8x128xf32>
    %cst_35 = arith.constant 0.0833333358 : f32
    %218 = vector.broadcast %cst_35 : f32 to vector<8x128xf32>
    %219 = arith.subf %218, %217 : vector<8x128xf32>
    %220 = arith.mulf %210, %219 : vector<8x128xf32>
    %cst_36 = arith.constant 5.000000e-01 : f32
    %221 = vector.broadcast %cst_36 : f32 to vector<8x128xf32>
    %222 = arith.subf %209, %221 : vector<8x128xf32>
    %223 = arith.mulf %222, %212 : vector<8x128xf32>
    %224 = arith.subf %223, %209 : vector<8x128xf32>
    %cst_37 = arith.constant 0.918938517 : f32
    %225 = vector.broadcast %cst_37 : f32 to vector<8x128xf32>
    %226 = arith.addf %224, %225 : vector<8x128xf32>
    %227 = arith.addf %226, %220 : vector<8x128xf32>
    %228 = arith.subf %227, %207 : vector<8x128xf32>
    %cst_38 = arith.constant 0.0039682542 : f32
    %229 = vector.broadcast %cst_38 : f32 to vector<8x128xf32>
    %230 = arith.mulf %211, %229 : vector<8x128xf32>
    %cst_39 = arith.constant 0.00833333377 : f32
    %231 = vector.broadcast %cst_39 : f32 to vector<8x128xf32>
    %232 = arith.subf %231, %230 : vector<8x128xf32>
    %233 = arith.mulf %211, %232 : vector<8x128xf32>
    %cst_40 = arith.constant 0.0833333358 : f32
    %234 = vector.broadcast %cst_40 : f32 to vector<8x128xf32>
    %235 = arith.subf %234, %233 : vector<8x128xf32>
    %236 = arith.mulf %211, %235 : vector<8x128xf32>
    %cst_41 = arith.constant 5.000000e-01 : f32
    %237 = vector.broadcast %cst_41 : f32 to vector<8x128xf32>
    %238 = arith.mulf %237, %210 : vector<8x128xf32>
    %239 = arith.subf %212, %238 : vector<8x128xf32>
    %240 = arith.subf %239, %236 : vector<8x128xf32>
    %241 = arith.subf %240, %206 : vector<8x128xf32>
    %cst_42 = arith.constant 1.000000e+00 : f32
    %242 = vector.broadcast %cst_42 : f32 to vector<2x128xf32>
    %243 = arith.addf %166, %242 : vector<2x128xf32>
    %cst_43 = arith.constant 2.000000e+00 : f32
    %244 = vector.broadcast %cst_43 : f32 to vector<2x128xf32>
    %245 = arith.addf %166, %244 : vector<2x128xf32>
    %cst_44 = arith.constant 3.000000e+00 : f32
    %246 = vector.broadcast %cst_44 : f32 to vector<2x128xf32>
    %247 = arith.addf %166, %246 : vector<2x128xf32>
    %cst_45 = arith.constant 4.000000e+00 : f32
    %248 = vector.broadcast %cst_45 : f32 to vector<2x128xf32>
    %249 = arith.addf %166, %248 : vector<2x128xf32>
    %cst_46 = arith.constant 5.000000e+00 : f32
    %250 = vector.broadcast %cst_46 : f32 to vector<2x128xf32>
    %251 = arith.addf %166, %250 : vector<2x128xf32>
    %252 = arith.mulf %166, %243 : vector<2x128xf32>
    %253 = arith.mulf %245, %247 : vector<2x128xf32>
    %254 = arith.mulf %249, %251 : vector<2x128xf32>
    %255 = arith.mulf %252, %254 : vector<2x128xf32>
    %256 = arith.mulf %255, %253 : vector<2x128xf32>
    %cst_47 = arith.constant 2.000000e+00 : f32
    %257 = vector.broadcast %cst_47 : f32 to vector<2x128xf32>
    %258 = arith.mulf %257, %166 : vector<2x128xf32>
    %cst_48 = arith.constant 1.000000e+00 : f32
    %259 = vector.broadcast %cst_48 : f32 to vector<2x128xf32>
    %260 = arith.addf %258, %259 : vector<2x128xf32>
    %261 = arith.mulf %253, %254 : vector<2x128xf32>
    %262 = arith.mulf %260, %261 : vector<2x128xf32>
    %cst_49 = arith.constant 2.000000e+00 : f32
    %263 = vector.broadcast %cst_49 : f32 to vector<2x128xf32>
    %264 = arith.mulf %263, %166 : vector<2x128xf32>
    %cst_50 = arith.constant 5.000000e+00 : f32
    %265 = vector.broadcast %cst_50 : f32 to vector<2x128xf32>
    %266 = arith.addf %264, %265 : vector<2x128xf32>
    %267 = arith.mulf %266, %255 : vector<2x128xf32>
    %268 = arith.addf %262, %267 : vector<2x128xf32>
    %cst_51 = arith.constant 2.000000e+00 : f32
    %269 = vector.broadcast %cst_51 : f32 to vector<2x128xf32>
    %270 = arith.mulf %269, %166 : vector<2x128xf32>
    %cst_52 = arith.constant 9.000000e+00 : f32
    %271 = vector.broadcast %cst_52 : f32 to vector<2x128xf32>
    %272 = arith.addf %270, %271 : vector<2x128xf32>
    %273 = arith.mulf %252, %253 : vector<2x128xf32>
    %274 = arith.mulf %272, %273 : vector<2x128xf32>
    %275 = arith.addf %268, %274 : vector<2x128xf32>
    %276 = tpu.reciprocal %256 {approx = true} : vector<2x128xf32> -> vector<2x128xf32>
    %277 = arith.mulf %256, %276 : vector<2x128xf32>
    %cst_53 = arith.constant 2.000000e+00 : f32
    %278 = vector.broadcast %cst_53 : f32 to vector<2x128xf32>
    %279 = arith.subf %278, %277 : vector<2x128xf32>
    %280 = arith.mulf %276, %279 : vector<2x128xf32>
    %281 = arith.mulf %275, %280 : vector<2x128xf32>
    %282 = math.log %256 : vector<2x128xf32>
    %cst_54 = arith.constant 6.000000e+00 : f32
    %283 = vector.broadcast %cst_54 : f32 to vector<2x128xf32>
    %284 = arith.addf %166, %283 : vector<2x128xf32>
    %285 = tpu.reciprocal %284 {approx = true} : vector<2x128xf32> -> vector<2x128xf32>
    %286 = arith.mulf %285, %285 : vector<2x128xf32>
    %287 = math.log %284 : vector<2x128xf32>
    %cst_55 = arith.constant 7.93650805E-4 : f32
    %288 = vector.broadcast %cst_55 : f32 to vector<2x128xf32>
    %289 = arith.mulf %286, %288 : vector<2x128xf32>
    %cst_56 = arith.constant 0.00277777785 : f32
    %290 = vector.broadcast %cst_56 : f32 to vector<2x128xf32>
    %291 = arith.subf %290, %289 : vector<2x128xf32>
    %292 = arith.mulf %286, %291 : vector<2x128xf32>
    %cst_57 = arith.constant 0.0833333358 : f32
    %293 = vector.broadcast %cst_57 : f32 to vector<2x128xf32>
    %294 = arith.subf %293, %292 : vector<2x128xf32>
    %295 = arith.mulf %285, %294 : vector<2x128xf32>
    %cst_58 = arith.constant 5.000000e-01 : f32
    %296 = vector.broadcast %cst_58 : f32 to vector<2x128xf32>
    %297 = arith.subf %284, %296 : vector<2x128xf32>
    %298 = arith.mulf %297, %287 : vector<2x128xf32>
    %299 = arith.subf %298, %284 : vector<2x128xf32>
    %cst_59 = arith.constant 0.918938517 : f32
    %300 = vector.broadcast %cst_59 : f32 to vector<2x128xf32>
    %301 = arith.addf %299, %300 : vector<2x128xf32>
    %302 = arith.addf %301, %295 : vector<2x128xf32>
    %303 = arith.subf %302, %282 : vector<2x128xf32>
    %cst_60 = arith.constant 0.0039682542 : f32
    %304 = vector.broadcast %cst_60 : f32 to vector<2x128xf32>
    %305 = arith.mulf %286, %304 : vector<2x128xf32>
    %cst_61 = arith.constant 0.00833333377 : f32
    %306 = vector.broadcast %cst_61 : f32 to vector<2x128xf32>
    %307 = arith.subf %306, %305 : vector<2x128xf32>
    %308 = arith.mulf %286, %307 : vector<2x128xf32>
    %cst_62 = arith.constant 0.0833333358 : f32
    %309 = vector.broadcast %cst_62 : f32 to vector<2x128xf32>
    %310 = arith.subf %309, %308 : vector<2x128xf32>
    %311 = arith.mulf %286, %310 : vector<2x128xf32>
    %cst_63 = arith.constant 5.000000e-01 : f32
    %312 = vector.broadcast %cst_63 : f32 to vector<2x128xf32>
    %313 = arith.mulf %312, %285 : vector<2x128xf32>
    %314 = arith.subf %287, %313 : vector<2x128xf32>
    %315 = arith.subf %314, %311 : vector<2x128xf32>
    %316 = arith.subf %315, %281 : vector<2x128xf32>
    %cst_64 = arith.constant 1.000000e+00 : f32
    %317 = vector.broadcast %cst_64 : f32 to vector<8x128xf32>
    %318 = arith.subf %145, %317 : vector<8x128xf32>
    %319 = arith.mulf %318, %241 : vector<8x128xf32>
    %320 = arith.subf %319, %228 : vector<8x128xf32>
    %321 = vector.extract_strided_slice %320 {offsets = [0, 0], sizes = [1, 128], strides = [1, 1]} : vector<8x128xf32> to vector<1x128xf32>
    %322 = vector.extract_strided_slice %320 {offsets = [1, 0], sizes = [1, 128], strides = [1, 1]} : vector<8x128xf32> to vector<1x128xf32>
    %323 = arith.addf %321, %322 : vector<1x128xf32>
    %324 = vector.extract_strided_slice %320 {offsets = [2, 0], sizes = [1, 128], strides = [1, 1]} : vector<8x128xf32> to vector<1x128xf32>
    %325 = arith.addf %323, %324 : vector<1x128xf32>
    %326 = vector.extract_strided_slice %320 {offsets = [3, 0], sizes = [1, 128], strides = [1, 1]} : vector<8x128xf32> to vector<1x128xf32>
    %327 = arith.addf %325, %326 : vector<1x128xf32>
    %328 = vector.extract_strided_slice %320 {offsets = [4, 0], sizes = [1, 128], strides = [1, 1]} : vector<8x128xf32> to vector<1x128xf32>
    %329 = vector.extract_strided_slice %320 {offsets = [5, 0], sizes = [1, 128], strides = [1, 1]} : vector<8x128xf32> to vector<1x128xf32>
    %330 = arith.addf %328, %329 : vector<1x128xf32>
    %331 = vector.extract_strided_slice %320 {offsets = [6, 0], sizes = [1, 128], strides = [1, 1]} : vector<8x128xf32> to vector<1x128xf32>
    %332 = arith.addf %330, %331 : vector<1x128xf32>
    %333 = vector.extract_strided_slice %320 {offsets = [7, 0], sizes = [1, 128], strides = [1, 1]} : vector<8x128xf32> to vector<1x128xf32>
    %334 = arith.addf %332, %333 : vector<1x128xf32>
    %335 = vector.shape_cast %327 : vector<1x128xf32> to vector<1x128xf32>
    %336 = vector.broadcast %335 : vector<1x128xf32> to vector<2x128xf32>
    %c1_i32_65 = arith.constant 1 : i32
    %337 = vector.broadcast %c1_i32_65 : i32 to vector<2x128xi32>
    %338 = arith.cmpi eq, %21, %337 : vector<2x128xi32>
    %339 = vector.shape_cast %334 : vector<1x128xf32> to vector<1x128xf32>
    %340 = vector.broadcast %339 : vector<1x128xf32> to vector<2x128xf32>
    %341 = arith.select %338, %340, %336 : vector<2x128xi1>, vector<2x128xf32>
    %342 = arith.addf %341, %303 : vector<2x128xf32>
    %cst_66 = arith.constant 4.000000e+00 : f32
    %343 = vector.broadcast %cst_66 : f32 to vector<2x128xf32>
    %344 = arith.subf %166, %343 : vector<2x128xf32>
    %345 = arith.mulf %316, %344 : vector<2x128xf32>
    %346 = arith.subf %342, %345 : vector<2x128xf32>
    %347 = arith.mulf %119, %35 : vector<2x128xf32>
    %348 = vector.shape_cast %347 : vector<2x128xf32> to vector<1x2x128xf32>
    %cst_67 = arith.constant dense<0.000000e+00> : vector<1xf32>
    %349 = vector.multi_reduction <add>, %348, %cst_67 [1, 2] : vector<1x2x128xf32> to vector<1xf32>
    %350 = vector.shape_cast %349 : vector<1xf32> to vector<1x1x1xf32>
    %351 = vector.extract %350[0, 0, 0] : f32 from vector<1x1x1xf32>
    %352 = arith.mulf %143, %35 : vector<2x128xf32>
    %353 = vector.shape_cast %352 : vector<2x128xf32> to vector<1x2x128xf32>
    %cst_68 = arith.constant dense<0.000000e+00> : vector<1xf32>
    %354 = vector.multi_reduction <add>, %353, %cst_68 [1, 2] : vector<1x2x128xf32> to vector<1xf32>
    %355 = vector.shape_cast %354 : vector<1xf32> to vector<1x1x1xf32>
    %356 = vector.extract %355[0, 0, 0] : f32 from vector<1x1x1xf32>
    %357 = arith.mulf %346, %35 : vector<2x128xf32>
    %358 = vector.shape_cast %357 : vector<2x128xf32> to vector<1x2x128xf32>
    %cst_69 = arith.constant dense<0.000000e+00> : vector<1xf32>
    %359 = vector.multi_reduction <add>, %358, %cst_69 [1, 2] : vector<1x2x128xf32> to vector<1xf32>
    %360 = vector.shape_cast %359 : vector<1xf32> to vector<1x1x1xf32>
    %361 = vector.extract %360[0, 0, 0] : f32 from vector<1x1x1xf32>
    %362 = tpu.iota {dimensions = array<i32: 2>} : vector<1x1x128xi32>
    %c0_i32_70 = arith.constant 0 : i32
    %363 = vector.broadcast %c0_i32_70 : i32 to vector<1x1x128xi32>
    %364 = arith.cmpi eq, %362, %363 : vector<1x1x128xi32>
    %cst_71 = arith.constant 0.000000e+00 : f32
    %365 = vector.broadcast %351 : f32 to vector<1x1x128xf32>
    %366 = vector.broadcast %cst_71 : f32 to vector<1x1x128xf32>
    %367 = arith.select %364, %365, %366 : vector<1x1x128xi1>, vector<1x1x128xf32>
    %c1_i32_72 = arith.constant 1 : i32
    %368 = vector.broadcast %c1_i32_72 : i32 to vector<1x1x128xi32>
    %369 = arith.cmpi eq, %362, %368 : vector<1x1x128xi32>
    %cst_73 = arith.constant 0.000000e+00 : f32
    %370 = vector.broadcast %356 : f32 to vector<1x1x128xf32>
    %371 = vector.broadcast %cst_73 : f32 to vector<1x1x128xf32>
    %372 = arith.select %369, %370, %371 : vector<1x1x128xi1>, vector<1x1x128xf32>
    %373 = arith.addf %367, %372 : vector<1x1x128xf32>
    %c2_i32 = arith.constant 2 : i32
    %374 = vector.broadcast %c2_i32 : i32 to vector<1x1x128xi32>
    %375 = arith.cmpi eq, %362, %374 : vector<1x1x128xi32>
    %cst_74 = arith.constant 0.000000e+00 : f32
    %376 = vector.broadcast %361 : f32 to vector<1x1x128xf32>
    %377 = vector.broadcast %cst_74 : f32 to vector<1x1x128xf32>
    %378 = arith.select %375, %376, %377 : vector<1x1x128xi1>, vector<1x1x128xf32>
    %379 = arith.addf %373, %378 : vector<1x1x128xf32>
    %c0_75 = arith.constant 0 : index
    %c0_76 = arith.constant 0 : index
    %c0_77 = arith.constant 0 : index
    %380 = vector.load %arg3[%c0_75, %c0_76, %c0_77] : memref<1x1x128xf32, #tpu.memory_space<vmem>>, vector<1x1x128xf32>
    tpu.vector_store %arg3[%c0_75, %c0_76, %c0_77], %379 {strides = array<i32>} : memref<1x1x128xf32, #tpu.memory_space<vmem>>, vector<1x1x128xf32>,
    return
  }
  func.func @transform_0(%arg0: i32) -> (i32, i32) {
    %c0_i32 = arith.constant 0 : i32
    %c0_i32_0 = arith.constant 0 : i32
    return %c0_i32, %arg0 : i32, i32
  }
  func.func @transform_1(%arg0: i32) -> (i32, i32) {
    %c0_i32 = arith.constant 0 : i32
    %c0_i32_0 = arith.constant 0 : i32
    return %c0_i32, %arg0 : i32, i32
  }
  func.func @transform_2(%arg0: i32) -> (i32, i32, i32) {
    %c0_i32 = arith.constant 0 : i32
    %c0_i32_0 = arith.constant 0 : i32
    %c0_i32_1 = arith.constant 0 : i32
    return %arg0, %c0_i32, %c0_i32_0 : i32, i32, i32
  }
}

</mosaic_0001>

<llo_original>
// kernel: tpu_custom_call.1
$region0: #{tpu_custom_call.1}
  #allocation0 [shape = 'u32[]', space=smem, size = 0x4, offset = 0x4, fixed_abs, tag = 'smem constant byte address 0x4 - core index']
  #allocation1 [shape = 'u32[144,128]{1,0:T(1,128)}', space=vmem, size = 0x12000, scoped, tag = 'internal scratch']
  %s0 = inlined_call_operand.hbm [shape: f32[8,128], index: 0, kind: input, shape index: {}]
  %s1 = inlined_call_operand.vmem [shape: s32[2,128], index: 1, kind: input, shape index: {}]
  %s2 = inlined_call_operand.hbm [shape: f32[1,1,128], index: 2, kind: output, shape index: {}]
  %s3 = sld [smem:[#allocation0]]
  $region22: #{tpu_custom_call.1} parent=0
    _
  %s5 = ssub.s32 1, %s3
  %s6 = scalar_select 0, %s5, %s3
  $region1: #{tpu_custom_call.1} parent=0
    #allocation2 [shape = 'u8[4096]{0}', space=vmem, size = 0x1000, scoped, tag = 'input window, operand 0, single buffered']
    #allocation3 [shape = 's32[1]{0}', space=sflag, size = 0x4, scoped, tag = 'scoped memory for tpu_custom_call.1']
    #allocation4 [shape = 's32[1]{0}', space=sflag, size = 0x4, scoped, tag = 'scoped memory for tpu_custom_call.1']
    #allocation5 [shape = 'u8[512]{0}', space=vmem, size = 0x400, scoped, tag = 'output window, operand 0, single buffered']
    %7 = vsyncpa [#allocation3], 0
    %8 = vsyncpa [#allocation4], 0
    // Predicated region
    $region2: #{tpu_custom_call.1} parent=1 // pred_check
      _
    $region3: #{tpu_custom_call.1} parent=1 // pred_check_branch
      %10 = sbr.rel (0) target = $region5
    $region4: #{tpu_custom_call.1} parent=1 // pred_region
      %s12 = ssub.s32 128, 128
      %13 = vsyncadd [#allocation3], %s12
      %s15 = sshll.u32 [#allocation2], 4
      %s16 = int_to_ptr.vmem [resolvable:$true] %s15
      %18 = dma.hbm_to_vmem [thread:$0]  %s0, 128, %s16, [#allocation3]
    $region5: #{tpu_custom_call.1} parent=1 // pred_fallthru
      _
    // Predicated region
    $region6: #{tpu_custom_call.1} parent=1 // pred_check
      _
    $region7: #{tpu_custom_call.1} parent=1 // pred_check_branch
      %20 = sbr.rel (0) target = $region9
    $region8: #{tpu_custom_call.1} parent=1 // pred_region
      _
    $region9: #{tpu_custom_call.1} parent=1 // pred_fallthru
      _
    // Predicated region
    $region10: #{tpu_custom_call.1} parent=1 // pred_check
      _
    $region11: #{tpu_custom_call.1} parent=1 // pred_check_branch
      %22 = sbr.rel (0) target = $region13
    $region12: #{tpu_custom_call.1} parent=1 // pred_region
      %23 = dma.done [#allocation3], 128
    $region13: #{tpu_custom_call.1} parent=1 // pred_fallthru
      _
    %v24 = vlaneseq
    %v25 = vshrl.u32 %v24, 7
    %v26 = vlaneseq
    %v27 = vand.u32 %v26, 127
    %s28 = smul.u32 0, 128
    %v29 = vstv %s28
    %v30 = vadd.s32 %v27, %v29
    %vm31 = vcmp.ge.s32.totalorder %v25, 4
    %v32 = vsel %vm31, 1, 0
    %v33 = vmul.u32 %v32, 4
    %v34 = vsub.s32 %v25, %v33
    %v35 = vmul.u32 %v32, 128
    %v36 = vadd.s32 %v35, %v30
    %vm37 = vcmp.lt.s32.totalorder %v30, 128
    %vm38 = vcmp.lt.s32.totalorder %v36, 8
    %vm39 = vmand %vm37, %vm38
    %v40 = vmul.u32 %v25, 128
    %v41 = vadd.s32 %v40, %v30
    %vm42 = vcmp.lt.s32.totalorder %v41, 8
    %vm43 = vmand %vm37, %vm42
    %v44 = vsel %vm43, 1, 0
    %v45 = vcvt.s32.f32 %v44
    %v46 = vld [vmem:[#allocation2] sm:$0xff]
    %v47 = vsel %vm39, %v46, 0.0
    %v48 = vadd.f32 %v47, 1.0
    %v49 = vld [vmem:[%s1] sm:$0x3]
    %v50 = vlaneseq
    %v51 = vshrl.u32 %v50, 7
    %v52 = vsub.s32 0, %v51
    %v53 = vrot.slane %v49, %v52
    %vm54 = vcmp.eq.s32.totalorder %v32, 1
    %v55 = vlaneseq
    %v56 = vshrl.u32 %v55, 7
    %v57 = vsub.s32 1, %v56
    %v58 = vrot.slane %v49, %v57
    %v59 = vsel %vm54, %v58, %v53
    %vm60 = vcmp.eq.s32.totalorder %v34, %v59
    %v62 = vrot.slane %v48, 1
    %v64 = vadd.f32 %v48, %v62
    %v65 = vrot.slane %v48, 2
    %v67 = vadd.f32 %v64, %v65
    %v68 = vrot.slane %v48, 3
    %v70 = vadd.f32 %v67, %v68
    %v71 = vlaneseq
    %v72 = vshrl.u32 %v71, 7
    %v73 = vsub.s32 0, %v72
    %v74 = vrot.slane %v70, %v73
    %vm75 = vcmp.eq.s32.totalorder %v25, 1
    %v76 = vlaneseq
    %v77 = vshrl.u32 %v76, 7
    %v78 = vsub.s32 4, %v77
    %v79 = vrot.slane %v70, %v78
    %v80 = vsel %vm75, %v79, %v74
    %v81 = vrcp.pop %v80
    %v82 = vmul.f32 %v80, %v81
    %v83 = vsub.f32 2.0, %v82
    %v84 = vmul.f32 %v81, %v83
    %v85 = vadd.f32 %v80, 1.0
    %v86 = vrcp.pop %v85
    %v87 = vmul.f32 %v85, %v86
    %v88 = vsub.f32 2.0, %v87
    %v89 = vmul.f32 %v86, %v88
    %v90 = vlaneseq
    %v91 = vshrl.u32 %v90, 7
    %v92 = vsub.s32 0, %v91
    %v93 = vrot.slane %v84, %v92
    %v94 = vlaneseq
    %v95 = vshrl.u32 %v94, 7
    %v96 = vsub.s32 1, %v95
    %v97 = vrot.slane %v84, %v96
    %v98 = vsel %vm54, %v97, %v93
    %v99 = vmul.f32 %v48, %v98
    %v100 = vsel %vm60, 1, 0
    %v101 = vcvt.s32.f32 %v100
    %v102 = vsub.f32 %v99, %v101
    %v103 = vmul.f32 %v102, %v102
    %v105 = vrot.slane %v103, 1
    %v107 = vadd.f32 %v103, %v105
    %v108 = vrot.slane %v103, 2
    %v110 = vadd.f32 %v107, %v108
    %v111 = vrot.slane %v103, 3
    %v113 = vadd.f32 %v110, %v111
    %v114 = vlaneseq
    %v115 = vshrl.u32 %v114, 7
    %v116 = vsub.s32 0, %v115
    %v117 = vrot.slane %v113, %v116
    %v118 = vlaneseq
    %v119 = vshrl.u32 %v118, 7
    %v120 = vsub.s32 4, %v119
    %v121 = vrot.slane %v113, %v120
    %v122 = vsel %vm75, %v121, %v117
    %v123 = vmul.f32 %v99, %v99
    %v124 = vsub.f32 %v99, %v123
    %v126 = vrot.slane %v124, 1
    %v128 = vadd.f32 %v124, %v126
    %v129 = vrot.slane %v124, 2
    %v131 = vadd.f32 %v128, %v129
    %v132 = vrot.slane %v124, 3
    %v134 = vadd.f32 %v131, %v132
    %v135 = vlaneseq
    %v136 = vshrl.u32 %v135, 7
    %v137 = vsub.s32 0, %v136
    %v138 = vrot.slane %v134, %v137
    %v139 = vlaneseq
    %v140 = vshrl.u32 %v139, 7
    %v141 = vsub.s32 4, %v140
    %v142 = vrot.slane %v134, %v141
    %v143 = vsel %vm75, %v142, %v138
    %v144 = vmul.f32 %v143, %v89
    %v145 = vsel %vm60, 1.0, %v48
    %v147 = vrot.slane %v145, 1
    %v149 = vadd.f32 %v145, %v147
    %v150 = vrot.slane %v145, 2
    %v152 = vadd.f32 %v149, %v150
    %v153 = vrot.slane %v145, 3
    %v155 = vadd.f32 %v152, %v153
    %v156 = vlaneseq
    %v157 = vshrl.u32 %v156, 7
    %v158 = vsub.s32 0, %v157
    %v159 = vrot.slane %v155, %v158
    %v160 = vlaneseq
    %v161 = vshrl.u32 %v160, 7
    %v162 = vsub.s32 4, %v161
    %v163 = vrot.slane %v155, %v162
    %v164 = vsel %vm75, %v163, %v159
    %v165 = vadd.f32 %v145, 1.0
    %v166 = vadd.f32 %v145, 2.0
    %v167 = vadd.f32 %v145, 3.0
    %v168 = vadd.f32 %v145, 4.0
    %v169 = vadd.f32 %v145, 5.0
    %v170 = vmul.f32 %v145, %v165
    %v171 = vmul.f32 %v166, %v167
    %v172 = vmul.f32 %v168, %v169
    %v173 = vmul.f32 %v170, %v172
    %v174 = vmul.f32 %v173, %v171
    %v175 = vmul.f32 %v145, 2.0
    %v176 = vadd.f32 %v175, 1.0
    %v177 = vmul.f32 %v171, %v172
    %v178 = vmul.f32 %v176, %v177
    %v179 = vadd.f32 %v175, 5.0
    %v180 = vmul.f32 %v179, %v173
    %v181 = vadd.f32 %v178, %v180
    %v182 = vadd.f32 %v175, 9.0
    %v183 = vmul.f32 %v170, %v171
    %v184 = vmul.f32 %v182, %v183
    %v185 = vadd.f32 %v181, %v184
    %v186 = vrcp.pop %v174
    %v187 = vmul.f32 %v174, %v186
    %v188 = vsub.f32 2.0, %v187
    %v189 = vmul.f32 %v186, %v188
    %v190 = vmul.f32 %v185, %v189
    %v191 = vlog2.pop %v174
    %v192 = vmul.f32 %v191, 0.6931472
    %v193 = vadd.f32 %v145, 6.0
    %v194 = vrcp.pop %v193
    %v195 = vmul.f32 %v194, %v194
    %v196 = vlog2.pop %v193
    %v197 = vmul.f32 %v196, 0.6931472
    %v198 = vmul.f32 %v195, 0.0007936508
    %v199 = vsub.f32 0.0027777778, %v198
    %v200 = vmul.f32 %v195, %v199
    %v201 = vsub.f32 0.083333336, %v200
    %v202 = vmul.f32 %v194, %v201
    %v203 = vsub.f32 %v193, 0.5
    %v204 = vmul.f32 %v203, %v197
    %v205 = vsub.f32 %v204, %v193
    %v206 = vadd.f32 %v205, 0.9189385
    %v207 = vadd.f32 %v206, %v202
    %v208 = vsub.f32 %v207, %v192
    %v209 = vmul.f32 %v195, 0.003968254
    %v210 = vsub.f32 0.008333334, %v209
    %v211 = vmul.f32 %v195, %v210
    %v212 = vsub.f32 0.083333336, %v211
    %v213 = vmul.f32 %v195, %v212
    %v214 = vmul.f32 %v194, 0.5
    %v215 = vsub.f32 %v197, %v214
    %v216 = vsub.f32 %v215, %v213
    %v217 = vsub.f32 %v216, %v190
    %v218 = vadd.f32 %v164, 1.0
    %v219 = vadd.f32 %v164, 2.0
    %v220 = vadd.f32 %v164, 3.0
    %v221 = vadd.f32 %v164, 4.0
    %v222 = vadd.f32 %v164, 5.0
    %v223 = vmul.f32 %v164, %v218
    %v224 = vmul.f32 %v219, %v220
    %v225 = vmul.f32 %v221, %v222
    %v226 = vmul.f32 %v223, %v225
    %v227 = vmul.f32 %v226, %v224
    %v228 = vmul.f32 %v164, 2.0
    %v229 = vadd.f32 %v228, 1.0
    %v230 = vmul.f32 %v224, %v225
    %v231 = vmul.f32 %v229, %v230
    %v232 = vadd.f32 %v228, 5.0
    %v233 = vmul.f32 %v232, %v226
    %v234 = vadd.f32 %v231, %v233
    %v235 = vadd.f32 %v228, 9.0
    %v236 = vmul.f32 %v223, %v224
    %v237 = vmul.f32 %v235, %v236
    %v238 = vadd.f32 %v234, %v237
    %v239 = vrcp.pop %v227
    %v240 = vmul.f32 %v227, %v239
    %v241 = vsub.f32 2.0, %v240
    %v242 = vmul.f32 %v239, %v241
    %v243 = vmul.f32 %v238, %v242
    %v244 = vlog2.pop %v227
    %v245 = vmul.f32 %v244, 0.6931472
    %v246 = vadd.f32 %v164, 6.0
    %v247 = vrcp.pop %v246
    %v248 = vmul.f32 %v247, %v247
    %v249 = vlog2.pop %v246
    %v250 = vmul.f32 %v249, 0.6931472
    %v251 = vmul.f32 %v248, 0.0007936508
    %v252 = vsub.f32 0.0027777778, %v251
    %v253 = vmul.f32 %v248, %v252
    %v254 = vsub.f32 0.083333336, %v253
    %v255 = vmul.f32 %v247, %v254
    %v256 = vsub.f32 %v246, 0.5
    %v257 = vmul.f32 %v256, %v250
    %v258 = vsub.f32 %v257, %v246
    %v259 = vadd.f32 %v258, 0.9189385
    %v260 = vadd.f32 %v259, %v255
    %v261 = vsub.f32 %v260, %v245
    %v262 = vmul.f32 %v248, 0.003968254
    %v263 = vsub.f32 0.008333334, %v262
    %v264 = vmul.f32 %v248, %v263
    %v265 = vsub.f32 0.083333336, %v264
    %v266 = vmul.f32 %v248, %v265
    %v267 = vmul.f32 %v247, 0.5
    %v268 = vsub.f32 %v250, %v267
    %v269 = vsub.f32 %v268, %v266
    %v270 = vsub.f32 %v269, %v243
    %v271 = vsub.f32 %v145, 1.0
    %v272 = vmul.f32 %v271, %v217
    %v273 = vsub.f32 %v272, %v208
    %v275 = vrot.slane %v273, 1
    %v277 = vadd.f32 %v273, %v275
    %v278 = vrot.slane %v273, 2
    %v280 = vadd.f32 %v277, %v278
    %v281 = vrot.slane %v273, 3
    %v283 = vadd.f32 %v280, %v281
    %v284 = vlaneseq
    %v285 = vshrl.u32 %v284, 7
    %v286 = vsub.s32 0, %v285
    %v287 = vrot.slane %v283, %v286
    %v288 = vlaneseq
    %v289 = vshrl.u32 %v288, 7
    %v290 = vsub.s32 4, %v289
    %v291 = vrot.slane %v283, %v290
    %v292 = vsel %vm75, %v291, %v287
    %v293 = vadd.f32 %v292, %v261
    %v294 = vsub.f32 %v164, 4.0
    %v295 = vmul.f32 %v270, %v294
    %v296 = vsub.f32 %v293, %v295
    %v297 = vmul.f32 %v122, %v45
    %vm298 = vcmask 1041408
    %v299 = vsel %vm298, %v297, 0.0
    %300 = vadd.xlane.f32.xlu0 %v299
    %v301 = vpop.xlane.xlu0 %300
    %v302 = vrot.slane %v301, 4
    %v303 = vadd.f32 %v301, %v302
    %v304 = vrot.slane %v303, 2
    %v305 = vadd.f32 %v303, %v304
    %v306 = vrot.slane %v305, 1
    %v307 = vadd.f32 %v305, %v306
    %s308 = vtos %v307
    %v309 = vmul.f32 %v144, %v45
    %v310 = vsel %vm298, %v309, 0.0
    %311 = vadd.xlane.f32.xlu0 %v310
    %v312 = vpop.xlane.xlu0 %311
    %v313 = vrot.slane %v312, 4
    %v314 = vadd.f32 %v312, %v313
    %v315 = vrot.slane %v314, 2
    %v316 = vadd.f32 %v314, %v315
    %v317 = vrot.slane %v316, 1
    %v318 = vadd.f32 %v316, %v317
    %s319 = vtos %v318
    %v320 = vmul.f32 %v296, %v45
    %v321 = vsel %vm298, %v320, 0.0
    %322 = vadd.xlane.f32.xlu0 %v321
    %v323 = vpop.xlane.xlu0 %322
    %v324 = vrot.slane %v323, 4
    %v325 = vadd.f32 %v323, %v324
    %v326 = vrot.slane %v325, 2
    %v327 = vadd.f32 %v325, %v326
    %v328 = vrot.slane %v327, 1
    %v329 = vadd.f32 %v327, %v328
    %s330 = vtos %v329
    %vm331 = vcmp.eq.s32.totalorder %v27, 0
    %v332 = vstv %s308
    %v333 = vsel %vm331, %v332, 0.0
    %vm334 = vcmp.eq.s32.totalorder %v27, 1
    %v335 = vstv %s319
    %v336 = vsel %vm334, %v335, 0.0
    %v337 = vadd.f32 %v333, %v336
    %vm338 = vcmp.eq.s32.totalorder %v27, 2
    %v339 = vstv %s330
    %v340 = vsel %vm338, %v339, 0.0
    %v341 = vadd.f32 %v337, %v340
    %342 = vst [vmem:[#allocation5] sm:$0x1] %v341
    // Predicated region
    $region14: #{tpu_custom_call.1} parent=1 // pred_check
      _
    $region15: #{tpu_custom_call.1} parent=1 // pred_check_branch
      %344 = sbr.rel (0) target = $region17
    $region16: #{tpu_custom_call.1} parent=1 // pred_region
      %s346 = ssub.s32 16, 16
      %347 = vsyncadd [#allocation4], %s346
      %s349 = sshll.u32 [#allocation5], 4
      %s350 = int_to_ptr.vmem [resolvable:$true] %s349
      %352 = dma.vmem_to_hbm [thread:$0]  %s350, 16, %s2, [#allocation4]
    $region17: #{tpu_custom_call.1} parent=1 // pred_fallthru
      _
    // Predicated region
    $region18: #{tpu_custom_call.1} parent=1 // pred_check
      _
    $region19: #{tpu_custom_call.1} parent=1 // pred_check_branch
      %354 = sbr.rel (0) target = $region21
    $region20: #{tpu_custom_call.1} parent=1 // pred_region
      %355 = dma.done [#allocation4], 16
    $region21: #{tpu_custom_call.1} parent=1 // pred_fallthru
      _
    %356 = vsyncpa [#allocation3], 1
    %357 = vsyncpa [#allocation4], 1

</llo_original>
